<compile_context>
chip_gen: v7x
topology: tpu7x:2x2x1
jax: 0.10.0
libtpu: 0.0.40
codegen_flags: <defaults>
</compile_context>

<pallas_src>
import functools

import numpy as np
import jax
import jax.numpy as jnp
from jax.experimental import pallas as pl
from jax.experimental.pallas import tpu as pltpu

LANE = 128


def _round_up(x, m):
    return ((x + m - 1) // m) * m


# ----------------------------------------------------------------------------
# Pallas kernels
# ----------------------------------------------------------------------------

def _conv_kernel(x_ref, w_ref, b_ref, m_ref, *out_refs, keff, wp, strip, mode):
    """Per-sample keff x keff stride-1 conv as shifted-strip MXU matmuls.

    x_ref : (1, Hp*Wp, Cin)        bf16  flattened padded image (one sample)
    w_ref : (keff*keff*Cin, CoutP) bf16  tap-major packed weights (resident)
    b_ref : (1, CoutP)             f32   bias (zeros where unused)
    m_ref : (strip, 1)             f32   1.0 on rows mapping to a valid (oh, ow)
                                         output, 0.0 on wrap-around rows
    out_refs by mode:
      "lrelu": (conv strip (1, strip, CoutP) bf16,)
      "stats": (conv strip bf16, BN partials (1, 8, CoutP) f32)
      "loss" : (loss partials (1, 8, 128) f32,)
    """
    cin = x_ref.shape[-1]
    coutp = w_ref.shape[-1]
    acc = jnp.zeros((strip, coutp), jnp.float32)
    for ka in range(keff):
        for kb in range(keff):
            start = ka * wp + kb
            win = x_ref[0, start:start + strip, :]                       # (strip, Cin) bf16
            wt = w_ref[(ka * keff + kb) * cin:(ka * keff + kb + 1) * cin, :]
            acc = acc + jnp.dot(win, wt, preferred_element_type=jnp.float32)
    acc = acc + b_ref[...]

    if mode == "lrelu":
        y = jnp.where(acc > 0, acc, 0.2 * acc)
        out_refs[0][0] = y.astype(out_refs[0].dtype)
    elif mode == "stats":
        out_refs[0][0] = acc.astype(out_refs[0].dtype)
        m = m_ref[...]                                                   # (strip, 1)
        s = jnp.sum(acc * m, axis=0, keepdims=True)                      # (1, CoutP)
        sq = jnp.sum(acc * acc * m, axis=0, keepdims=True)
        rows = jax.lax.broadcasted_iota(jnp.int32, (8, coutp), 0)
        out_refs[1][0] = jnp.where(rows == 0, s, jnp.where(rows == 1, sq, 0.0))
    else:  # "loss": fused hinge / mean partial sums over the single real logit lane
        m = m_ref[...]
        lane = jax.lax.broadcasted_iota(jnp.int32, (strip, coutp), 1)
        vm = m * (lane == 0).astype(jnp.float32)
        p_sum = jnp.sum(acc * vm)
        p_r1m = jnp.sum(jnp.maximum(1.0 - acc, 0.0) * vm)
        p_r1p = jnp.sum(jnp.maximum(1.0 + acc, 0.0) * vm)
        rows = jax.lax.broadcasted_iota(jnp.int32, (8, LANE), 0)
        out_refs[0][0] = jnp.where(rows == 0, p_sum,
                         jnp.where(rows == 1, p_r1m,
                         jnp.where(rows == 2, p_r1p, 0.0)))


def _affine_lrelu_kernel(x_ref, sc_ref, sh_ref, o_ref):
    # y = LeakyReLU_0.2(x * scale + shift)  -- fused BatchNorm apply
    x = x_ref[0].astype(jnp.float32)       # (OH, OW, C)
    y = x * sc_ref[0] + sh_ref[0]          # (1, 1, C) broadcast
    o_ref[0] = jnp.where(y > 0, y, 0.2 * y).astype(o_ref.dtype)


def _abs_sum_kernel(a_ref, b_ref, o_ref):
    # tiled sum(|a - b|) into a resident lane-dense (1, 128) accumulator output
    @pl.when(pl.program_id(0) == 0)
    def _():
        o_ref[...] = jnp.zeros_like(o_ref)
    o_ref[...] += jnp.sum(jnp.abs(a_ref[...] - b_ref[...]), axis=0, keepdims=True)


# ----------------------------------------------------------------------------
# Loss reduction wrapper
# ----------------------------------------------------------------------------

def _l1_mean(a, b, tile_rows=512):
    e = int(a.size)
    af = a.reshape(-1).astype(jnp.float32)
    bf = b.reshape(-1).astype(jnp.float32)
    chunk = tile_rows * LANE
    ep = _round_up(e, chunk)
    af = jnp.pad(af, (0, ep - e))
    bf = jnp.pad(bf, (0, ep - e))
    am = af.reshape(ep // LANE, LANE)
    bm = bf.reshape(ep // LANE, LANE)
    grid = ep // chunk
    s = pl.pallas_call(
        _abs_sum_kernel,
        grid=(grid,),
        out_shape=jax.ShapeDtypeStruct((1, LANE), jnp.float32),
        in_specs=[pl.BlockSpec((tile_rows, LANE), lambda i: (i, 0)),
                  pl.BlockSpec((tile_rows, LANE), lambda i: (i, 0))],
        out_specs=pl.BlockSpec((1, LANE), lambda i: (0, 0)),
        compiler_params=pltpu.CompilerParams(dimension_semantics=("arbitrary",)),
    )(am, bm)
    return jnp.sum(s) / e


# ----------------------------------------------------------------------------
# Conv layer plumbing (JAX-side layout only; compute is in the Pallas kernel)
# ----------------------------------------------------------------------------

def _prep_conv_input(x, stride):
    """NHWC activation -> flattened padded (phase-stacked for stride 2) image.
    Returns (xflat (B, Hp*Wp, Ck) bf16, keff, OH, OW, Wp)."""
    b, h, w, c = x.shape
    oh = (h + 2 - 4) // stride + 1
    ow = (w + 2 - 4) // stride + 1
    xp = jnp.pad(x, ((0, 0), (1, 1), (1, 1), (0, 0)))
    hp, wp = h + 2, w + 2
    if stride == 1:
        return xp.reshape(b, hp * wp, c), 4, oh, ow, wp
    if hp % 2:
        xp = jnp.pad(xp, ((0, 0), (0, 1), (0, 0), (0, 0)))
        hp += 1
    if wp % 2:
        xp = jnp.pad(xp, ((0, 0), (0, 0), (0, 1), (0, 0)))
        wp += 1
    # space-to-depth: stride-2 4x4 conv == stride-1 2x2 conv over 4x channels
    phases = [xp[:, di::2, dj::2, :] for di in (0, 1) for dj in (0, 1)]
    xs = jnp.concatenate(phases, axis=-1)              # (B, hp/2, wp/2, 4C)
    hh, wh = hp // 2, wp // 2
    return xs.reshape(b, hh * wh, 4 * c), 2, oh, ow, wh


def _conv_layer(h, layer, mode):
    xf, keff, oh, ow, wp = _prep_conv_input(h, layer["stride"])
    bsz, hpw, cink = xf.shape
    coutp = int(layer["wmat"].shape[1])
    strip = (oh - 1) * wp + ow
    rmask = jnp.asarray(((np.arange(strip) % wp) < ow)
                        .astype(np.float32).reshape(strip, 1))

    kern = functools.partial(_conv_kernel, keff=keff, wp=wp, strip=strip, mode=mode)
    in_specs = [pl.BlockSpec((1, hpw, cink), lambda n: (n, 0, 0)),
                pl.BlockSpec(layer["wmat"].shape, lambda n: (0, 0)),
                pl.BlockSpec(layer["bias"].shape, lambda n: (0, 0)),
                pl.BlockSpec((strip, 1), lambda n: (0, 0))]
    if mode == "loss":
        out_shape = jax.ShapeDtypeStruct((bsz, 8, LANE), jnp.float32)
        out_specs = pl.BlockSpec((1, 8, LANE), lambda n: (n, 0, 0))
    elif mode == "stats":
        out_shape = (jax.ShapeDtypeStruct((bsz, strip, coutp), jnp.bfloat16),
                     jax.ShapeDtypeStruct((bsz, 8, coutp), jnp.float32))
        out_specs = (pl.BlockSpec((1, strip, coutp), lambda n: (n, 0, 0)),
                     pl.BlockSpec((1, 8, coutp), lambda n: (n, 0, 0)))
    else:  # lrelu
        out_shape = jax.ShapeDtypeStruct((bsz, strip, coutp), jnp.bfloat16)
        out_specs = pl.BlockSpec((1, strip, coutp), lambda n: (n, 0, 0))

    flops = int(2 * bsz * keff * keff * strip * cink * coutp)
    bytes_acc = int(xf.size) * 2 + int(layer["wmat"].size) * 2 + bsz * strip * coutp * 2
    out = pl.pallas_call(
        kern,
        grid=(bsz,),
        out_shape=out_shape,
        in_specs=in_specs,
        out_specs=out_specs,
        compiler_params=pltpu.CompilerParams(dimension_semantics=("parallel",)),
        cost_estimate=pl.CostEstimate(flops=flops, transcendentals=0,
                                      bytes_accessed=int(bytes_acc)),
    )(xf, layer["wmat"], layer["bias"], rmask)
    return out, oh, ow, wp


def _strip_to_nhwc(strip_out, oh, ow, wp):
    bsz, l, c = strip_out.shape
    y = jnp.pad(strip_out, ((0, 0), (0, oh * wp - l), (0, 0)))
    return y.reshape(bsz, oh, wp, c)[:, :, :ow, :]


def _bn_scale_shift(stats, gamma_p, beta_p, spatial, n_groups):
    bsz, _, c = stats.shape
    g = bsz // n_groups
    st = stats.reshape(n_groups, g, 8, c)
    ssum = jnp.sum(st[:, :, 0, :], axis=1)
    ssq = jnp.sum(st[:, :, 1, :], axis=1)
    cnt = float(g * spatial)
    mean = ssum / cnt
    # TODO(synk): E[x^2]-E[x]^2 can cancel for very large activations; a Welford /
    # two-pass variance would need another full pass over the conv output.
    var = jnp.maximum(ssq / cnt - mean * mean, 0.0)
    inv = jax.lax.rsqrt(var + 1e-5)
    scale = gamma_p[None, :] * inv
    shift = beta_p[None, :] - mean * scale
    scale = jnp.repeat(scale, g, axis=0).reshape(bsz, 1, 1, c)
    shift = jnp.repeat(shift, g, axis=0).reshape(bsz, 1, 1, c)
    return scale, shift


def _affine_lrelu(x, scale, shift):
    bsz, oh, ow, c = x.shape
    return pl.pallas_call(
        _affine_lrelu_kernel,
        grid=(bsz,),
        out_shape=jax.ShapeDtypeStruct((bsz, oh, ow, c), jnp.bfloat16),
        in_specs=[pl.BlockSpec((1, oh, ow, c), lambda n: (n, 0, 0, 0)),
                  pl.BlockSpec((1, 1, 1, c), lambda n: (n, 0, 0, 0)),
                  pl.BlockSpec((1, 1, 1, c), lambda n: (n, 0, 0, 0))],
        out_specs=pl.BlockSpec((1, oh, ow, c), lambda n: (n, 0, 0, 0)),
        compiler_params=pltpu.CompilerParams(dimension_semantics=("parallel",)),
    )(x, scale, shift)


# ----------------------------------------------------------------------------
# PatchGAN (NLayer) discriminator: params + packing + forward
# ----------------------------------------------------------------------------

def build_patchgan_params(key, input_nc=3, ndf=64, n_layers=3):
    """Deterministic init matching weights_init: conv ~ N(0,0.02), BN gamma ~ N(1,0.02)."""
    keys = iter(jax.random.split(key, 4 * (n_layers + 3)))

    def conv_w(cout, cin):
        return 0.02 * jax.random.normal(next(keys), (cout, cin, 4, 4), jnp.float32)

    layers = [dict(kind="conv_lrelu", w=conv_w(ndf, input_nc),
                   b=jnp.zeros((ndf,), jnp.float32), stride=2)]
    nf_mult = 1
    for n_ in range(1, n_layers):
        nf_prev, nf_mult = nf_mult, min(2 ** n_, 8)
        layers.append(dict(kind="conv_bn_lrelu",
                           w=conv_w(ndf * nf_mult, ndf * nf_prev),
                           b=jnp.zeros((ndf * nf_mult,), jnp.float32),   # conv bias=False
                           gamma=1.0 + 0.02 * jax.random.normal(next(keys), (ndf * nf_mult,), jnp.float32),
                           beta=jnp.zeros((ndf * nf_mult,), jnp.float32),
                           stride=2))
    nf_prev, nf_mult = nf_mult, min(2 ** n_layers, 8)
    layers.append(dict(kind="conv_bn_lrelu",
                       w=conv_w(ndf * nf_mult, ndf * nf_prev),
                       b=jnp.zeros((ndf * nf_mult,), jnp.float32),
                       gamma=1.0 + 0.02 * jax.random.normal(next(keys), (ndf * nf_mult,), jnp.float32),
                       beta=jnp.zeros((ndf * nf_mult,), jnp.float32),
                       stride=1))
    layers.append(dict(kind="conv", w=conv_w(1, ndf * nf_mult),
                       b=jnp.zeros((1,), jnp.float32), stride=1))
    return layers


def _pack_weight_s1(w, cin_p, cout_p):
    cout, cin, k, _ = w.shape
    wp = jnp.zeros((cout_p, cin_p, k, k), jnp.float32).at[:cout, :cin].set(w)
    return jnp.transpose(wp, (2, 3, 1, 0)).reshape(k * k * cin_p, cout_p).astype(jnp.bfloat16)


def _pack_weight_s2(w, cin_p, cout_p):
    # pack for the space-to-depth rewrite: 2x2 taps over 4*cin_p phase channels
    cout, cin, _, _ = w.shape
    wp = jnp.zeros((cout_p, cin_p, 4, 4), jnp.float32).at[:cout, :cin].set(w)
    w6 = wp.reshape(cout_p, cin_p, 2, 2, 2, 2)        # (co, c, a, di, b, dj)
    weff = jnp.transpose(w6, (2, 4, 3, 5, 1, 0))      # (a, b, di, dj, c, co)
    return weff.reshape(16 * cin_p, cout_p).astype(jnp.bfloat16)


def prep_patchgan_layers(raw_layers, input_nc):
    prepped = []
    cin_p = input_nc                 # first layer keeps the raw image channels
    for lyr in raw_layers:
        cout = int(lyr["w"].shape[0])
        cout_p = max(LANE, _round_up(cout, LANE))   # lane-dense output channels
        pack = _pack_weight_s2 if lyr["stride"] == 2 else _pack_weight_s1
        entry = dict(kind=lyr["kind"], stride=lyr["stride"],
                     wmat=pack(lyr["w"], cin_p, cout_p),
                     bias=jnp.zeros((1, cout_p), jnp.float32).at[0, :cout].set(lyr["b"]),
                     cout=cout, cout_p=cout_p)
        if "gamma" in lyr:
            entry["gamma_p"] = jnp.zeros((cout_p,), jnp.float32).at[:cout].set(lyr["gamma"])
            entry["beta_p"] = jnp.zeros((cout_p,), jnp.float32).at[:cout].set(lyr["beta"])
        prepped.append(entry)
        cin_p = cout_p               # next layer consumes the padded channels
    return prepped


def patchgan_partials(layers, x_nchw, n_groups):
    """Runs the discriminator.  Returns per-sample fused partials (B, 8, 128)
    with row0 = sum(logits), row1 = sum(relu(1-logits)), row2 = sum(relu(1+logits)),
    plus the per-sample number of patch logits."""
    h = jnp.transpose(x_nchw, (0, 2, 3, 1)).astype(jnp.bfloat16)   # NCHW -> NHWC bf16
    for lyr in layers:
        mode = {"conv_lrelu": "lrelu", "conv_bn_lrelu": "stats", "conv": "loss"}[lyr["kind"]]
        out, oh, ow, wp = _conv_layer(h, lyr, mode)
        if mode == "loss":
            return out, oh * ow
        if mode == "stats":
            strip_out, stats = out
        else:
            strip_out, stats = out, None
        act = _strip_to_nhwc(strip_out, oh, ow, wp)
        if mode == "stats":
            scale, shift = _bn_scale_shift(stats, lyr["gamma_p"], lyr["beta_p"],
                                           oh * ow, n_groups)
            act = _affine_lrelu(act, scale, shift)
        h = act
    raise ValueError("discriminator has no final prediction conv")


# ----------------------------------------------------------------------------
# VQLPIPSWithDiscriminator (JAX / Pallas)
# ----------------------------------------------------------------------------

class VQLPIPSWithDiscriminator:
    def __init__(self, disc_start, codebook_weight=1.0, pixelloss_weight=1.0,
                 disc_num_layers=3, disc_in_channels=3, disc_factor=1.0, disc_weight=1.0,
                 reconstruct_weight=1.0, perceptual_weight=0.0, disc_ndf=64,
                 disc_loss="hinge", skip_disc=False, use_adaptive_disc_weight=False,
                 num_frames=1, codebook_rampup_multiplier=1.0, codebook_rampup_steps=0,
                 param_key=None):
        assert disc_loss == "hinge"   # hinge configuration (vanilla path not exercised)
        self.codebook_weight = codebook_weight
        self.codebook_rampup_multiplier = codebook_rampup_multiplier
        self.codebook_rampup_steps = codebook_rampup_steps
        self.pixel_weight = pixelloss_weight
        self.reconstruct_weight = reconstruct_weight
        self.perceptual_weight = perceptual_weight
        # TODO(synk): LPIPS perceptual loss needs pretrained VGG weights; module is
        # instantiated with perceptual_weight=0 so p_loss == zeros (exact PyTorch branch).
        self.adaptive_dweight = use_adaptive_disc_weight
        # TODO(synk): adaptive d_weight requires autograd through the generator last
        # layer; configured with use_adaptive_disc_weight=False (d_weight = disc_weight).
        assert not use_adaptive_disc_weight
        self.discriminator_iter_start = disc_start
        self.skip_disc_before_start = skip_disc
        self.disc_factor = disc_factor
        self.discriminator_weight = disc_weight
        self.num_frames = num_frames
        if param_key is None:
            param_key = jax.random.PRNGKey(0)
        raw = build_patchgan_params(param_key, disc_in_channels, disc_ndf, disc_num_layers)
        self.layers = prep_patchgan_layers(raw, disc_in_channels)

    # -- forward --------------------------------------------------------------
    def forward(self, codebook_loss, inputs, reconstructions, optimizer_idx,
                global_step, split="train"):
        if inputs.ndim == 5:   # n c t h w -> (n t) c h w
            assert self.num_frames == inputs.shape[2]
            n, c, t, h, w = inputs.shape
            inputs = inputs.transpose(0, 2, 1, 3, 4).reshape(n * t, c, h, w)
            reconstructions = reconstructions.transpose(0, 2, 1, 3, 4).reshape(n * t, c, h, w)

        rec_mean = _l1_mean(inputs, reconstructions)
        p_mean = jnp.float32(0.0)   # perceptual_weight <= 0 branch: p_loss = zeros
        nll_loss = self.reconstruct_weight * rec_mean + self.perceptual_weight * p_mean

        if global_step < self.discriminator_iter_start and self.skip_disc_before_start:
            loss = nll_loss + self.codebook_weight * codebook_loss
            log = {f"{split}/total_loss": loss, f"{split}/quant_loss": codebook_loss,
                   f"{split}/nll_loss": nll_loss, f"{split}/rec_loss": rec_mean,
                   f"{split}/p_loss": p_mean}
            return nll_loss, log

        disc_factor = 1.0 if global_step >= self.discriminator_iter_start else 0.0

        if optimizer_idx == 0:
            partials, spatial = patchgan_partials(self.layers, reconstructions, n_groups=1)
            cnt = partials.shape[0] * spatial
            g_loss = -jnp.sum(partials[:, 0, 0]) / cnt
            d_weight = jnp.float32(self.discriminator_weight)
            if self.codebook_rampup_steps > 0:
                rr = min(self.codebook_rampup_steps, global_step) / self.codebook_rampup_steps
                cb_weight = self.codebook_weight * (1.0 * rr + self.codebook_rampup_multiplier * (1 - rr))
            else:
                cb_weight = self.codebook_weight
            loss = nll_loss + d_weight * disc_factor * g_loss + cb_weight * codebook_loss
            log = {f"{split}/total_loss": loss, f"{split}/quant_loss": codebook_loss,
                   f"{split}/nll_loss": nll_loss, f"{split}/rec_loss": rec_mean,
                   f"{split}/p_loss": p_mean, f"{split}/d_weight": d_weight,
                   f"{split}/disc_factor": jnp.float32(disc_factor),
                   f"{split}/g_loss": g_loss}
            return loss, log

        if optimizer_idx == 1:
            # one pass over the concatenated batch (shared weight DMA); BN stats are
            # computed per half, matching PyTorch's two separate discriminator calls.
            n = inputs.shape[0]
            both = jnp.concatenate([inputs, reconstructions], axis=0)
            partials, spatial = patchgan_partials(self.layers, both, n_groups=2)
            cnt = n * spatial
            pr, pf = partials[:n], partials[n:]
            loss_real = jnp.sum(pr[:, 1, 0]) / cnt
            loss_fake = jnp.sum(pf[:, 2, 0]) / cnt
            d_loss = disc_factor * 0.5 * (loss_real + loss_fake)
            log = {f"{split}/disc_loss": d_loss,
                   f"{split}/logits_real": jnp.sum(pr[:, 0, 0]) / cnt,
                   f"{split}/logits_fake": jnp.sum(pf[:, 0, 0]) / cnt}
            # TODO(synk): R1 gradient-penalty path (disc_reg_freq>0) needs grad through
            # the discriminator; not exercised.
            return d_loss, log


# ----------------------------------------------------------------------------
# main
# ----------------------------------------------------------------------------

if __name__ == "__main__":
    key = jax.random.PRNGKey(0)
    k_in, k_noise, k_params = jax.random.split(key, 3)

    # small NCHW inputs: batch=2, channels=3, spatial=16
    inputs = jax.random.normal(k_in, (2, 3, 16, 16), jnp.float32)
    reconstructions = inputs + 0.1 * jax.random.normal(k_noise, (2, 3, 16, 16), jnp.float32)
    codebook_loss = jnp.float32(0.05)

    loss_mod = VQLPIPSWithDiscriminator(
        disc_start=0, disc_num_layers=2, disc_in_channels=3, disc_ndf=8,
        perceptual_weight=0.0, use_adaptive_disc_weight=False,
        disc_loss="hinge", param_key=k_params)

    # generator update (optimizer_idx=0)
    g_total, g_log = loss_mod.forward(codebook_loss, inputs, reconstructions,
                                      optimizer_idx=0, global_step=10)
    # discriminator update (optimizer_idx=1)
    d_total, d_log = loss_mod.forward(codebook_loss, inputs, reconstructions,
                                      optimizer_idx=1, global_step=10)

    jax.block_until_ready((g_total, d_total,
                           tuple(g_log.values()), tuple(d_log.values())))
    print("KERNEL_OK")
</pallas_src>

<mosaic_0001>
module attributes {stable_mosaic.version = 11 : i64} {
  func.func @_abs_sum_kernel(%arg0: i32, %arg1: memref<512x128xf32, #tpu.memory_space<vmem>>, %arg2: memref<512x128xf32, #tpu.memory_space<vmem>>, %arg3: memref<1x128xf32, #tpu.memory_space<vmem>>) attributes {dimension_semantics = [#tpu.dimension_semantics<arbitrary>], iteration_bounds = array<i64: 1>, scalar_prefetch = 0 : i64, scratch_operands = 0 : i64, tpu.core_type = #tpu.core_type<tc>, window_params = [{transform_indices = @transform_0, window_bounds = array<i64: 512, 128>}, {transform_indices = @transform_1, window_bounds = array<i64: 512, 128>}, {pipeline_mode = #tpu.pipeline_mode<synchronous>, transform_indices = @transform_2, window_bounds = array<i64: 1, 128>}]} {
    %c0_i32 = arith.constant 0 : i32
    %0 = arith.cmpi eq, %arg0, %c0_i32 : i32
    %1 = arith.extui %0 : i1 to i32
    %c0_i32_0 = arith.constant 0 : i32
    %2 = arith.cmpi ne, %1, %c0_i32_0 : i32
    scf.if %2 {
      %cst_8 = arith.constant 0.000000e+00 : f32
      %12 = vector.broadcast %cst_8 : f32 to vector<1x128xf32>
      %c0_9 = arith.constant 0 : index
      %c0_10 = arith.constant 0 : index
      %13 = vector.load %arg3[%c0_9, %c0_10] : memref<1x128xf32, #tpu.memory_space<vmem>>, vector<1x128xf32>
      tpu.vector_store %arg3[%c0_9, %c0_10], %12 {strides = array<i32>} : memref<1x128xf32, #tpu.memory_space<vmem>>, vector<1x128xf32>,
    } else {
    }
    %c0 = arith.constant 0 : index
    %c0_1 = arith.constant 0 : index
    %3 = vector.load %arg3[%c0, %c0_1] : memref<1x128xf32, #tpu.memory_space<vmem>>, vector<1x128xf32>
    %c0_2 = arith.constant 0 : index
    %c0_3 = arith.constant 0 : index
    %4 = vector.load %arg1[%c0_2, %c0_3] : memref<512x128xf32, #tpu.memory_space<vmem>>, vector<512x128xf32>
    %c0_4 = arith.constant 0 : index
    %c0_5 = arith.constant 0 : index
    %5 = vector.load %arg2[%c0_4, %c0_5] : memref<512x128xf32, #tpu.memory_space<vmem>>, vector<512x128xf32>
    %6 = arith.subf %4, %5 : vector<512x128xf32>
    %7 = math.absf %6 : vector<512x128xf32>
    %cst = arith.constant dense<0.000000e+00> : vector<128xf32>
    %8 = vector.multi_reduction <add>, %7, %cst [0] : vector<512x128xf32> to vector<128xf32>
    %9 = vector.shape_cast %8 : vector<128xf32> to vector<1x128xf32>
    %10 = arith.addf %3, %9 : vector<1x128xf32>
    %c0_6 = arith.constant 0 : index
    %c0_7 = arith.constant 0 : index
    %11 = vector.load %arg3[%c0_6, %c0_7] : memref<1x128xf32, #tpu.memory_space<vmem>>, vector<1x128xf32>
    tpu.vector_store %arg3[%c0_6, %c0_7], %10 {strides = array<i32>} : memref<1x128xf32, #tpu.memory_space<vmem>>, vector<1x128xf32>,
    return
  }
  func.func @transform_0(%arg0: i32) -> (i32, i32) {
    %c0_i32 = arith.constant 0 : i32
    %c0_i32_0 = arith.constant 0 : i32
    return %arg0, %c0_i32 : i32, i32
  }
  func.func @transform_1(%arg0: i32) -> (i32, i32) {
    %c0_i32 = arith.constant 0 : i32
    %c0_i32_0 = arith.constant 0 : i32
    return %arg0, %c0_i32 : i32, i32
  }
  func.func @transform_2(%arg0: i32) -> (i32, i32) {
    %c0_i32 = arith.constant 0 : i32
    %c0_i32_0 = arith.constant 0 : i32
    %c0_i32_1 = arith.constant 0 : i32
    return %c0_i32, %c0_i32_0 : i32, i32
  }
}

</mosaic_0001>

<llo_original>
// kernel: tpu_custom_call.1
$region0: #{tpu_custom_call.1}
  #allocation0 [shape = 'u32[]', space=smem, size = 0x4, offset = 0x4, fixed_abs, tag = 'smem constant byte address 0x4 - core index']
  #allocation1 [shape = 'u32[144,128]{1,0:T(1,128)}', space=vmem, size = 0x12000, scoped, tag = 'internal scratch']
  %s0 = inlined_call_operand.hbm [shape: f32[512,128], index: 0, kind: input, shape index: {}]
  %s1 = inlined_call_operand.hbm [shape: f32[512,128], index: 1, kind: input, shape index: {}]
  %s2 = inlined_call_operand.hbm [shape: f32[1,128], index: 2, kind: output, shape index: {}]
  %s3 = sld [smem:[#allocation0]]
  $region30: #{tpu_custom_call.1} parent=0
    _
  %s5 = ssub.s32 1, %s3
  %s6 = scalar_select 0, %s5, %s3
  $region1: #{tpu_custom_call.1} parent=0
    #allocation2 [shape = 'u8[262144]{0}', space=vmem, size = 0x40000, scoped, tag = 'input window, operand 0, single buffered']
    #allocation3 [shape = 's32[1]{0}', space=sflag, size = 0x4, scoped, tag = 'scoped memory for tpu_custom_call.1']
    #allocation4 [shape = 's32[1]{0}', space=sflag, size = 0x4, scoped, tag = 'scoped memory for tpu_custom_call.1']
    #allocation5 [shape = 'u8[262144]{0}', space=vmem, size = 0x40000, scoped, tag = 'input window, operand 1, single buffered']
    #allocation6 [shape = 's32[1]{0}', space=sflag, size = 0x4, scoped, tag = 'scoped memory for tpu_custom_call.1']
    #allocation7 [shape = 'u8[512]{0}', space=vmem, size = 0x400, scoped, tag = 'output window, operand 0, single buffered']
    %7 = vsyncpa [#allocation3], 0
    %8 = vsyncpa [#allocation6], 0
    %9 = vsyncpa [#allocation4], 0
    // Predicated region
    $region2: #{tpu_custom_call.1} parent=1 // pred_check
      _
    $region3: #{tpu_custom_call.1} parent=1 // pred_check_branch
      %11 = sbr.rel (0) target = $region5
    $region4: #{tpu_custom_call.1} parent=1 // pred_region
      %s13 = ssub.s32 8192, 8192
      %14 = vsyncadd [#allocation3], %s13
      %s15 = sshll.u32 [#allocation2], 4
      %s16 = int_to_ptr.vmem [resolvable:$true] %s15
      %21 = dma.hbm_to_vmem [thread:$0]  %s0, 8192, %s16, [#allocation3], 128, 128, 8
    $region5: #{tpu_custom_call.1} parent=1 // pred_fallthru
      _
    // Predicated region
    $region6: #{tpu_custom_call.1} parent=1 // pred_check
      _
    $region7: #{tpu_custom_call.1} parent=1 // pred_check_branch
      %23 = sbr.rel (0) target = $region9
    $region8: #{tpu_custom_call.1} parent=1 // pred_region
      %s25 = ssub.s32 8192, 8192
      %26 = vsyncadd [#allocation6], %s25
      %s27 = sshll.u32 [#allocation5], 4
      %s28 = int_to_ptr.vmem [resolvable:$true] %s27
      %33 = dma.hbm_to_vmem [thread:$0]  %s1, 8192, %s28, [#allocation6], 128, 128, 8
    $region9: #{tpu_custom_call.1} parent=1 // pred_fallthru
      _
    // Predicated region
    $region10: #{tpu_custom_call.1} parent=1 // pred_check
      _
    $region11: #{tpu_custom_call.1} parent=1 // pred_check_branch
      %35 = sbr.rel (0) target = $region13
    $region12: #{tpu_custom_call.1} parent=1 // pred_region
      %36 = dma.done [#allocation3], 8192
    $region13: #{tpu_custom_call.1} parent=1 // pred_fallthru
      _
    // Predicated region
    $region14: #{tpu_custom_call.1} parent=1 // pred_check
      _
    $region15: #{tpu_custom_call.1} parent=1 // pred_check_branch
      %38 = sbr.rel (0) target = $region17
    $region16: #{tpu_custom_call.1} parent=1 // pred_region
      %39 = dma.done [#allocation6], 8192
    $region17: #{tpu_custom_call.1} parent=1 // pred_fallthru
      _
    %p40 = scmp.eq.s32.totalorder 0, 0
    // Predicated region
    $region18: #{tpu_custom_call.1} parent=1 // pred_check
      %p41 = pneg %p40
    $region19: #{tpu_custom_call.1} parent=1 // pred_check_branch
      %43 = sbr.rel (%p41) target = $region21
    $region20: #{tpu_custom_call.1} parent=1 // pred_region
      %44 = vst [vmem:[#allocation7] sm:$0x1] 0.0
    $region21: #{tpu_custom_call.1} parent=1 // pred_fallthru
      _
    %v45 = vld [vmem:[#allocation7] sm:$0x1]
    %v46 = vld [vmem:[#allocation2] sm:$0xff]
    %v47 = vld [vmem:[#allocation2 + $0x8] sm:$0xff]
    %v48 = vld [vmem:[#allocation2 + $0x10] sm:$0xff]
    %v49 = vld [vmem:[#allocation2 + $0x18] sm:$0xff]
    %v50 = vld [vmem:[#allocation2 + $0x20] sm:$0xff]
    %v51 = vld [vmem:[#allocation2 + $0x28] sm:$0xff]
    %v52 = vld [vmem:[#allocation2 + $0x30] sm:$0xff]
    %v53 = vld [vmem:[#allocation2 + $0x38] sm:$0xff]
    %v54 = vld [vmem:[#allocation2 + $0x40] sm:$0xff]
    %v55 = vld [vmem:[#allocation2 + $0x48] sm:$0xff]
    %v56 = vld [vmem:[#allocation2 + $0x50] sm:$0xff]
    %v57 = vld [vmem:[#allocation2 + $0x58] sm:$0xff]
    %v58 = vld [vmem:[#allocation2 + $0x60] sm:$0xff]
    %v59 = vld [vmem:[#allocation2 + $0x68] sm:$0xff]
    %v60 = vld [vmem:[#allocation2 + $0x70] sm:$0xff]
    %v61 = vld [vmem:[#allocation2 + $0x78] sm:$0xff]
    %v62 = vld [vmem:[#allocation2 + $0x80] sm:$0xff]
    %v63 = vld [vmem:[#allocation2 + $0x88] sm:$0xff]
    %v64 = vld [vmem:[#allocation2 + $0x90] sm:$0xff]
    %v65 = vld [vmem:[#allocation2 + $0x98] sm:$0xff]
    %v66 = vld [vmem:[#allocation2 + $0xa0] sm:$0xff]
    %v67 = vld [vmem:[#allocation2 + $0xa8] sm:$0xff]
    %v68 = vld [vmem:[#allocation2 + $0xb0] sm:$0xff]
    %v69 = vld [vmem:[#allocation2 + $0xb8] sm:$0xff]
    %v70 = vld [vmem:[#allocation2 + $0xc0] sm:$0xff]
    %v71 = vld [vmem:[#allocation2 + $0xc8] sm:$0xff]
    %v72 = vld [vmem:[#allocation2 + $0xd0] sm:$0xff]
    %v73 = vld [vmem:[#allocation2 + $0xd8] sm:$0xff]
    %v74 = vld [vmem:[#allocation2 + $0xe0] sm:$0xff]
    %v75 = vld [vmem:[#allocation2 + $0xe8] sm:$0xff]
    %v76 = vld [vmem:[#allocation2 + $0xf0] sm:$0xff]
    %v77 = vld [vmem:[#allocation2 + $0xf8] sm:$0xff]
    %v78 = vld [vmem:[#allocation2 + $0x100] sm:$0xff]
    %v79 = vld [vmem:[#allocation2 + $0x108] sm:$0xff]
    %v80 = vld [vmem:[#allocation2 + $0x110] sm:$0xff]
    %v81 = vld [vmem:[#allocation2 + $0x118] sm:$0xff]
    %v82 = vld [vmem:[#allocation2 + $0x120] sm:$0xff]
    %v83 = vld [vmem:[#allocation2 + $0x128] sm:$0xff]
    %v84 = vld [vmem:[#allocation2 + $0x130] sm:$0xff]
    %v85 = vld [vmem:[#allocation2 + $0x138] sm:$0xff]
    %v86 = vld [vmem:[#allocation2 + $0x140] sm:$0xff]
    %v87 = vld [vmem:[#allocation2 + $0x148] sm:$0xff]
    %v88 = vld [vmem:[#allocation2 + $0x150] sm:$0xff]
    %v89 = vld [vmem:[#allocation2 + $0x158] sm:$0xff]
    %v90 = vld [vmem:[#allocation2 + $0x160] sm:$0xff]
    %v91 = vld [vmem:[#allocation2 + $0x168] sm:$0xff]
    %v92 = vld [vmem:[#allocation2 + $0x170] sm:$0xff]
    %v93 = vld [vmem:[#allocation2 + $0x178] sm:$0xff]
    %v94 = vld [vmem:[#allocation2 + $0x180] sm:$0xff]
    %v95 = vld [vmem:[#allocation2 + $0x188] sm:$0xff]
    %v96 = vld [vmem:[#allocation2 + $0x190] sm:$0xff]
    %v97 = vld [vmem:[#allocation2 + $0x198] sm:$0xff]
    %v98 = vld [vmem:[#allocation2 + $0x1a0] sm:$0xff]
    %v99 = vld [vmem:[#allocation2 + $0x1a8] sm:$0xff]
    %v100 = vld [vmem:[#allocation2 + $0x1b0] sm:$0xff]
    %v101 = vld [vmem:[#allocation2 + $0x1b8] sm:$0xff]
    %v102 = vld [vmem:[#allocation2 + $0x1c0] sm:$0xff]
    %v103 = vld [vmem:[#allocation2 + $0x1c8] sm:$0xff]
    %v104 = vld [vmem:[#allocation2 + $0x1d0] sm:$0xff]
    %v105 = vld [vmem:[#allocation2 + $0x1d8] sm:$0xff]
    %v106 = vld [vmem:[#allocation2 + $0x1e0] sm:$0xff]
    %v107 = vld [vmem:[#allocation2 + $0x1e8] sm:$0xff]
    %v108 = vld [vmem:[#allocation2 + $0x1f0] sm:$0xff]
    %v109 = vld [vmem:[#allocation2 + $0x1f8] sm:$0xff]
    %v110 = vld [vmem:[#allocation5] sm:$0xff]
    %v111 = vld [vmem:[#allocation5 + $0x8] sm:$0xff]
    %v112 = vld [vmem:[#allocation5 + $0x10] sm:$0xff]
    %v113 = vld [vmem:[#allocation5 + $0x18] sm:$0xff]
    %v114 = vld [vmem:[#allocation5 + $0x20] sm:$0xff]
    %v115 = vld [vmem:[#allocation5 + $0x28] sm:$0xff]
    %v116 = vld [vmem:[#allocation5 + $0x30] sm:$0xff]
    %v117 = vld [vmem:[#allocation5 + $0x38] sm:$0xff]
    %v118 = vld [vmem:[#allocation5 + $0x40] sm:$0xff]
    %v119 = vld [vmem:[#allocation5 + $0x48] sm:$0xff]
    %v120 = vld [vmem:[#allocation5 + $0x50] sm:$0xff]
    %v121 = vld [vmem:[#allocation5 + $0x58] sm:$0xff]
    %v122 = vld [vmem:[#allocation5 + $0x60] sm:$0xff]
    %v123 = vld [vmem:[#allocation5 + $0x68] sm:$0xff]
    %v124 = vld [vmem:[#allocation5 + $0x70] sm:$0xff]
    %v125 = vld [vmem:[#allocation5 + $0x78] sm:$0xff]
    %v126 = vld [vmem:[#allocation5 + $0x80] sm:$0xff]
    %v127 = vld [vmem:[#allocation5 + $0x88] sm:$0xff]
    %v128 = vld [vmem:[#allocation5 + $0x90] sm:$0xff]
    %v129 = vld [vmem:[#allocation5 + $0x98] sm:$0xff]
    %v130 = vld [vmem:[#allocation5 + $0xa0] sm:$0xff]
    %v131 = vld [vmem:[#allocation5 + $0xa8] sm:$0xff]
    %v132 = vld [vmem:[#allocation5 + $0xb0] sm:$0xff]
    %v133 = vld [vmem:[#allocation5 + $0xb8] sm:$0xff]
    %v134 = vld [vmem:[#allocation5 + $0xc0] sm:$0xff]
    %v135 = vld [vmem:[#allocation5 + $0xc8] sm:$0xff]
    %v136 = vld [vmem:[#allocation5 + $0xd0] sm:$0xff]
    %v137 = vld [vmem:[#allocation5 + $0xd8] sm:$0xff]
    %v138 = vld [vmem:[#allocation5 + $0xe0] sm:$0xff]
    %v139 = vld [vmem:[#allocation5 + $0xe8] sm:$0xff]
    %v140 = vld [vmem:[#allocation5 + $0xf0] sm:$0xff]
    %v141 = vld [vmem:[#allocation5 + $0xf8] sm:$0xff]
    %v142 = vld [vmem:[#allocation5 + $0x100] sm:$0xff]
    %v143 = vld [vmem:[#allocation5 + $0x108] sm:$0xff]
    %v144 = vld [vmem:[#allocation5 + $0x110] sm:$0xff]
    %v145 = vld [vmem:[#allocation5 + $0x118] sm:$0xff]
    %v146 = vld [vmem:[#allocation5 + $0x120] sm:$0xff]
    %v147 = vld [vmem:[#allocation5 + $0x128] sm:$0xff]
    %v148 = vld [vmem:[#allocation5 + $0x130] sm:$0xff]
    %v149 = vld [vmem:[#allocation5 + $0x138] sm:$0xff]
    %v150 = vld [vmem:[#allocation5 + $0x140] sm:$0xff]
    %v151 = vld [vmem:[#allocation5 + $0x148] sm:$0xff]
    %v152 = vld [vmem:[#allocation5 + $0x150] sm:$0xff]
    %v153 = vld [vmem:[#allocation5 + $0x158] sm:$0xff]
    %v154 = vld [vmem:[#allocation5 + $0x160] sm:$0xff]
    %v155 = vld [vmem:[#allocation5 + $0x168] sm:$0xff]
    %v156 = vld [vmem:[#allocation5 + $0x170] sm:$0xff]
    %v157 = vld [vmem:[#allocation5 + $0x178] sm:$0xff]
    %v158 = vld [vmem:[#allocation5 + $0x180] sm:$0xff]
    %v159 = vld [vmem:[#allocation5 + $0x188] sm:$0xff]
    %v160 = vld [vmem:[#allocation5 + $0x190] sm:$0xff]
    %v161 = vld [vmem:[#allocation5 + $0x198] sm:$0xff]
    %v162 = vld [vmem:[#allocation5 + $0x1a0] sm:$0xff]
    %v163 = vld [vmem:[#allocation5 + $0x1a8] sm:$0xff]
    %v164 = vld [vmem:[#allocation5 + $0x1b0] sm:$0xff]
    %v165 = vld [vmem:[#allocation5 + $0x1b8] sm:$0xff]
    %v166 = vld [vmem:[#allocation5 + $0x1c0] sm:$0xff]
    %v167 = vld [vmem:[#allocation5 + $0x1c8] sm:$0xff]
    %v168 = vld [vmem:[#allocation5 + $0x1d0] sm:$0xff]
    %v169 = vld [vmem:[#allocation5 + $0x1d8] sm:$0xff]
    %v170 = vld [vmem:[#allocation5 + $0x1e0] sm:$0xff]
    %v171 = vld [vmem:[#allocation5 + $0x1e8] sm:$0xff]
    %v172 = vld [vmem:[#allocation5 + $0x1f0] sm:$0xff]
    %v173 = vld [vmem:[#allocation5 + $0x1f8] sm:$0xff]
    %v174 = vsub.f32 %v46, %v110
    %v175 = vsub.f32 %v47, %v111
    %v176 = vsub.f32 %v48, %v112
    %v177 = vsub.f32 %v49, %v113
    %v178 = vsub.f32 %v50, %v114
    %v179 = vsub.f32 %v51, %v115
    %v180 = vsub.f32 %v52, %v116
    %v181 = vsub.f32 %v53, %v117
    %v182 = vsub.f32 %v54, %v118
    %v183 = vsub.f32 %v55, %v119
    %v184 = vsub.f32 %v56, %v120
    %v185 = vsub.f32 %v57, %v121
    %v186 = vsub.f32 %v58, %v122
    %v187 = vsub.f32 %v59, %v123
    %v188 = vsub.f32 %v60, %v124
    %v189 = vsub.f32 %v61, %v125
    %v190 = vsub.f32 %v62, %v126
    %v191 = vsub.f32 %v63, %v127
    %v192 = vsub.f32 %v64, %v128
    %v193 = vsub.f32 %v65, %v129
    %v194 = vsub.f32 %v66, %v130
    %v195 = vsub.f32 %v67, %v131
    %v196 = vsub.f32 %v68, %v132
    %v197 = vsub.f32 %v69, %v133
    %v198 = vsub.f32 %v70, %v134
    %v199 = vsub.f32 %v71, %v135
    %v200 = vsub.f32 %v72, %v136
    %v201 = vsub.f32 %v73, %v137
    %v202 = vsub.f32 %v74, %v138
    %v203 = vsub.f32 %v75, %v139
    %v204 = vsub.f32 %v76, %v140
    %v205 = vsub.f32 %v77, %v141
    %v206 = vsub.f32 %v78, %v142
    %v207 = vsub.f32 %v79, %v143
    %v208 = vsub.f32 %v80, %v144
    %v209 = vsub.f32 %v81, %v145
    %v210 = vsub.f32 %v82, %v146
    %v211 = vsub.f32 %v83, %v147
    %v212 = vsub.f32 %v84, %v148
    %v213 = vsub.f32 %v85, %v149
    %v214 = vsub.f32 %v86, %v150
    %v215 = vsub.f32 %v87, %v151
    %v216 = vsub.f32 %v88, %v152
    %v217 = vsub.f32 %v89, %v153
    %v218 = vsub.f32 %v90, %v154
    %v219 = vsub.f32 %v91, %v155
    %v220 = vsub.f32 %v92, %v156
    %v221 = vsub.f32 %v93, %v157
    %v222 = vsub.f32 %v94, %v158
    %v223 = vsub.f32 %v95, %v159
    %v224 = vsub.f32 %v96, %v160
    %v225 = vsub.f32 %v97, %v161
    %v226 = vsub.f32 %v98, %v162
    %v227 = vsub.f32 %v99, %v163
    %v228 = vsub.f32 %v100, %v164
    %v229 = vsub.f32 %v101, %v165
    %v230 = vsub.f32 %v102, %v166
    %v231 = vsub.f32 %v103, %v167
    %v232 = vsub.f32 %v104, %v168
    %v233 = vsub.f32 %v105, %v169
    %v234 = vsub.f32 %v106, %v170
    %v235 = vsub.f32 %v107, %v171
    %v236 = vsub.f32 %v108, %v172
    %v237 = vsub.f32 %v109, %v173
    %v238 = vand.u32 2147483647, %v174
    %v239 = vand.u32 2147483647, %v175
    %v240 = vand.u32 2147483647, %v176
    %v241 = vand.u32 2147483647, %v177
    %v242 = vand.u32 2147483647, %v178
    %v243 = vand.u32 2147483647, %v179
    %v244 = vand.u32 2147483647, %v180
    %v245 = vand.u32 2147483647, %v181
    %v246 = vand.u32 2147483647, %v182
    %v247 = vand.u32 2147483647, %v183
    %v248 = vand.u32 2147483647, %v184
    %v249 = vand.u32 2147483647, %v185
    %v250 = vand.u32 2147483647, %v186
    %v251 = vand.u32 2147483647, %v187
    %v252 = vand.u32 2147483647, %v188
    %v253 = vand.u32 2147483647, %v189
    %v254 = vand.u32 2147483647, %v190
    %v255 = vand.u32 2147483647, %v191
    %v256 = vand.u32 2147483647, %v192
    %v257 = vand.u32 2147483647, %v193
    %v258 = vand.u32 2147483647, %v194
    %v259 = vand.u32 2147483647, %v195
    %v260 = vand.u32 2147483647, %v196
    %v261 = vand.u32 2147483647, %v197
    %v262 = vand.u32 2147483647, %v198
    %v263 = vand.u32 2147483647, %v199
    %v264 = vand.u32 2147483647, %v200
    %v265 = vand.u32 2147483647, %v201
    %v266 = vand.u32 2147483647, %v202
    %v267 = vand.u32 2147483647, %v203
    %v268 = vand.u32 2147483647, %v204
    %v269 = vand.u32 2147483647, %v205
    %v270 = vand.u32 2147483647, %v206
    %v271 = vand.u32 2147483647, %v207
    %v272 = vand.u32 2147483647, %v208
    %v273 = vand.u32 2147483647, %v209
    %v274 = vand.u32 2147483647, %v210
    %v275 = vand.u32 2147483647, %v211
    %v276 = vand.u32 2147483647, %v212
    %v277 = vand.u32 2147483647, %v213
    %v278 = vand.u32 2147483647, %v214
    %v279 = vand.u32 2147483647, %v215
    %v280 = vand.u32 2147483647, %v216
    %v281 = vand.u32 2147483647, %v217
    %v282 = vand.u32 2147483647, %v218
    %v283 = vand.u32 2147483647, %v219
    %v284 = vand.u32 2147483647, %v220
    %v285 = vand.u32 2147483647, %v221
    %v286 = vand.u32 2147483647, %v222
    %v287 = vand.u32 2147483647, %v223
    %v288 = vand.u32 2147483647, %v224
    %v289 = vand.u32 2147483647, %v225
    %v290 = vand.u32 2147483647, %v226
    %v291 = vand.u32 2147483647, %v227
    %v292 = vand.u32 2147483647, %v228
    %v293 = vand.u32 2147483647, %v229
    %v294 = vand.u32 2147483647, %v230
    %v295 = vand.u32 2147483647, %v231
    %v296 = vand.u32 2147483647, %v232
    %v297 = vand.u32 2147483647, %v233
    %v298 = vand.u32 2147483647, %v234
    %v299 = vand.u32 2147483647, %v235
    %v300 = vand.u32 2147483647, %v236
    %v301 = vand.u32 2147483647, %v237
    %v302 = vadd.f32 %v238, %v239
    %v303 = vadd.f32 %v302, %v240
    %v304 = vadd.f32 %v303, %v241
    %v305 = vadd.f32 %v304, %v242
    %v306 = vadd.f32 %v305, %v243
    %v307 = vadd.f32 %v306, %v244
    %v308 = vadd.f32 %v307, %v245
    %v309 = vadd.f32 %v308, %v246
    %v310 = vadd.f32 %v309, %v247
    %v311 = vadd.f32 %v310, %v248
    %v312 = vadd.f32 %v311, %v249
    %v313 = vadd.f32 %v312, %v250
    %v314 = vadd.f32 %v313, %v251
    %v315 = vadd.f32 %v314, %v252
    %v316 = vadd.f32 %v315, %v253
    %v317 = vadd.f32 %v316, %v254
    %v318 = vadd.f32 %v317, %v255
    %v319 = vadd.f32 %v318, %v256
    %v320 = vadd.f32 %v319, %v257
    %v321 = vadd.f32 %v320, %v258
    %v322 = vadd.f32 %v321, %v259
    %v323 = vadd.f32 %v322, %v260
    %v324 = vadd.f32 %v323, %v261
    %v325 = vadd.f32 %v324, %v262
    %v326 = vadd.f32 %v325, %v263
    %v327 = vadd.f32 %v326, %v264
    %v328 = vadd.f32 %v327, %v265
    %v329 = vadd.f32 %v328, %v266
    %v330 = vadd.f32 %v329, %v267
    %v331 = vadd.f32 %v330, %v268
    %v332 = vadd.f32 %v331, %v269
    %v333 = vadd.f32 %v332, %v270
    %v334 = vadd.f32 %v333, %v271
    %v335 = vadd.f32 %v334, %v272
    %v336 = vadd.f32 %v335, %v273
    %v337 = vadd.f32 %v336, %v274
    %v338 = vadd.f32 %v337, %v275
    %v339 = vadd.f32 %v338, %v276
    %v340 = vadd.f32 %v339, %v277
    %v341 = vadd.f32 %v340, %v278
    %v342 = vadd.f32 %v341, %v279
    %v343 = vadd.f32 %v342, %v280
    %v344 = vadd.f32 %v343, %v281
    %v345 = vadd.f32 %v344, %v282
    %v346 = vadd.f32 %v345, %v283
    %v347 = vadd.f32 %v346, %v284
    %v348 = vadd.f32 %v347, %v285
    %v349 = vadd.f32 %v348, %v286
    %v350 = vadd.f32 %v349, %v287
    %v351 = vadd.f32 %v350, %v288
    %v352 = vadd.f32 %v351, %v289
    %v353 = vadd.f32 %v352, %v290
    %v354 = vadd.f32 %v353, %v291
    %v355 = vadd.f32 %v354, %v292
    %v356 = vadd.f32 %v355, %v293
    %v357 = vadd.f32 %v356, %v294
    %v358 = vadd.f32 %v357, %v295
    %v359 = vadd.f32 %v358, %v296
    %v360 = vadd.f32 %v359, %v297
    %v361 = vadd.f32 %v360, %v298
    %v362 = vadd.f32 %v361, %v299
    %v363 = vadd.f32 %v362, %v300
    %v364 = vadd.f32 %v363, %v301
    %v365 = vrot.slane %v364, 4
    %v366 = vadd.f32 %v364, %v365
    %v367 = vrot.slane %v366, 2
    %v368 = vadd.f32 %v366, %v367
    %v369 = vrot.slane %v368, 1
    %v370 = vadd.f32 %v368, %v369
    %v371 = vadd.f32 %v45, %v370
    %372 = vst [vmem:[#allocation7] sm:$0x1] %v371
    // Predicated region
    $region22: #{tpu_custom_call.1} parent=1 // pred_check
      _
    $region23: #{tpu_custom_call.1} parent=1 // pred_check_branch
      %374 = sbr.rel (0) target = $region25
    $region24: #{tpu_custom_call.1} parent=1 // pred_region
      %s376 = ssub.s32 16, 16
      %377 = vsyncadd [#allocation4], %s376
      %s379 = sshll.u32 [#allocation7], 4
      %s380 = int_to_ptr.vmem [resolvable:$true] %s379
      %382 = dma.vmem_to_hbm [thread:$0]  %s380, 16, %s2, [#allocation4]
    $region25: #{tpu_custom_call.1} parent=1 // pred_fallthru
      _
    // Predicated region
    $region26: #{tpu_custom_call.1} parent=1 // pred_check
      _
    $region27: #{tpu_custom_call.1} parent=1 // pred_check_branch
      %384 = sbr.rel (0) target = $region29
    $region28: #{tpu_custom_call.1} parent=1 // pred_region
      %385 = dma.done [#allocation4], 16
    $region29: #{tpu_custom_call.1} parent=1 // pred_fallthru
      _
    %386 = vsyncpa [#allocation3], 1
    %387 = vsyncpa [#allocation6], 1
    %388 = vsyncpa [#allocation4], 1

</llo_original>
